<compile_context>
chip_gen: v6e
topology: v6e:2x2x1
jax: 0.10.0
libtpu: 0.0.40
codegen_flags: <defaults>
</compile_context>

<pallas_src>
import functools

import jax
import jax.numpy as jnp
from jax.experimental import pallas as pl
from jax.experimental.pallas import tpu as pltpu

LANE = 128
SUBLANE = 8
MAX_TILE_M = 1024   # batch tile; multiple of 8, well inside VMEM on all gens
MIN_SPLIT_M = 64    # below this, a megacore split isn't worth the extra step


def _round_up(n, m):
    return ((n + m - 1) // m) * m


def _choose_tile_m(m):
    """Pick the batch tile. Full-dim block for small batches (no pad/clip)."""
    tile_m = min(m, MAX_TILE_M)
    # Megacore (v7x): guarantee >= 2 grid steps when the batch is big enough
    # so the "parallel" axis can shard across two TensorCores.
    if m > MIN_SPLIT_M and pl.cdiv(m, tile_m) < 2:
        tile_m = pl.cdiv(m, 2)
    # Any non-full-dim tile must be a multiple of 8 sublanes.
    if tile_m < m:
        tile_m = _round_up(tile_m, SUBLANE)
    return tile_m


def _fused_mlp_kernel(x_ref, w_in_ref, w_stack_ref, b_ref, o_ref, *,
                      num_stacked: int):
    """Whole decoder for one batch tile.

    x_ref:       (tile_m, latent)        f32
    w_in_ref:    (latent, D)             bf16   first Linear
    w_stack_ref: (num_stacked, D, D)     bf16   remaining Linears (last=alpha)
    b_ref:       (num_stacked + 1, D)    f32    all biases
    o_ref:       (tile_m, D)             f32
    """
    b_all = b_ref[...]                                     # tiny, load once

    # First hidden layer: Linear(latent -> D) + ReLU.
    h = jnp.dot(x_ref[...].astype(jnp.bfloat16), w_in_ref[...],
                preferred_element_type=jnp.float32)
    h = jnp.maximum(h + b_all[0:1, :], 0.0)

    # Remaining hidden layers (+ReLU) and final alpha layer (no activation).
    for i in range(num_stacked):
        h = jnp.dot(h.astype(jnp.bfloat16), w_stack_ref[i],
                    preferred_element_type=jnp.float32)
        h = h + b_all[i + 1:i + 2, :]
        if i < num_stacked - 1:
            h = jnp.maximum(h, 0.0)

    o_ref[...] = h.astype(o_ref.dtype)


def fused_decoder_forward(x, w_in, w_stack, b_stack, *, latent, out_dim, d_pad):
    """x: (batch, latent) f32.  Returns (batch, out_dim) f32."""
    m = x.shape[0]
    num_stacked = w_stack.shape[0]

    tile_m = _choose_tile_m(m)
    grid = (pl.cdiv(m, tile_m),)

    kernel = functools.partial(_fused_mlp_kernel, num_stacked=num_stacked)

    out = pl.pallas_call(
        kernel,
        out_shape=jax.ShapeDtypeStruct((m, d_pad), jnp.float32),
        grid=grid,
        in_specs=[
            pl.BlockSpec((tile_m, latent), lambda i: (i, 0)),
            # Constant index maps: weights/biases are DMA'd once and stay
            # VMEM-resident across all batch tiles.
            pl.BlockSpec(w_in.shape, lambda i: (0, 0)),
            pl.BlockSpec(w_stack.shape, lambda i: (0, 0, 0)),
            pl.BlockSpec(b_stack.shape, lambda i: (0, 0)),
        ],
        out_specs=pl.BlockSpec((tile_m, d_pad), lambda i: (i, 0)),
        compiler_params=pltpu.CompilerParams(
            dimension_semantics=("parallel",),
            vmem_limit_bytes=32 * 1024 * 1024),
    )(x, w_in, w_stack, b_stack)

    if out_dim != d_pad:
        out = out[:, :out_dim]
    return out


def _init_linear(key, fan_in, fan_out):
    # PyTorch nn.Linear default init: U(-1/sqrt(fan_in), 1/sqrt(fan_in)).
    kw, kb = jax.random.split(key)
    bound = 1.0 / float(fan_in) ** 0.5
    w = jax.random.uniform(kw, (fan_in, fan_out), jnp.float32, -bound, bound)
    b = jax.random.uniform(kb, (fan_out,), jnp.float32, -bound, bound)
    return w, b


def _pad2(a, rows, cols):
    r, c = a.shape
    return jnp.pad(a, ((0, rows - r), (0, cols - c)))


class NetDecoderGammaPallas:
    """Mirrors the PyTorch NetDecoderGamma forward pass.

    PyTorch layer order: Linear(latent, layers[-1]) -> ... ->
    Linear(layers[1], layers[0]) with ReLU after each, then
    alpha = Linear(layers[0], input_size) with no activation.
    """

    def __init__(self, input_size, layers, latent, key):
        self.latent = latent
        self.input_size = input_size

        dims = [latent] + list(reversed(layers)) + [input_size]
        keys = jax.random.split(key, len(dims) - 1)

        # Original (unpadded, f32) params, used by the plain-JAX reference.
        self.params = [
            _init_linear(keys[i], dims[i], dims[i + 1])
            for i in range(len(dims) - 1)
        ]

        # One lane-dense padded width for every non-latent feature dim, so all
        # post-first weights share a shape and can be stacked into one array.
        d_pad = max(_round_up(d, LANE) for d in dims[1:])
        self.d_pad = d_pad

        w0, _ = self.params[0]
        self.w_in = _pad2(w0, latent, d_pad).astype(jnp.bfloat16)
        self.w_stack = jnp.stack(
            [_pad2(w, d_pad, d_pad) for (w, _) in self.params[1:]]
        ).astype(jnp.bfloat16)
        self.b_stack = jnp.stack(
            [jnp.pad(b, (0, d_pad - b.shape[0])) for (_, b) in self.params]
        ).astype(jnp.float32)

    def __call__(self, x):
        x = x.reshape(-1, self.latent).astype(jnp.float32)
        return fused_decoder_forward(
            x, self.w_in, self.w_stack, self.b_stack,
            latent=self.latent,
            out_dim=self.input_size,
            d_pad=self.d_pad)


def reference_forward(model, x):
    """Plain-JAX f32 reference for the correctness check."""
    x = x.reshape(-1, model.latent).astype(jnp.float32)
    for (w, b) in model.params[:-1]:
        x = jnp.maximum(x @ w + b, 0.0)
    w_a, b_a = model.params[-1]
    return x @ w_a + b_a


if __name__ == "__main__":
    key = jax.random.PRNGKey(0)
    k_params, k_x = jax.random.split(key)

    input_size = 64
    layers = [32, 24, 16]
    latent = 8
    batch = 2

    model = NetDecoderGammaPallas(input_size, layers, latent, k_params)

    # Input of shape (batch, latent); forward does x.view(-1, latent) itself.
    x = jax.random.normal(k_x, (batch, latent), dtype=jnp.float32)

    alpha = model(x)
    alpha = jax.block_until_ready(alpha)

    assert alpha.shape == (batch, input_size), alpha.shape

    # bf16 MXU operands with f32 accumulation -> loose tolerance vs f32 ref.
    ref = reference_forward(model, x)
    assert jnp.allclose(alpha, ref, atol=3e-2, rtol=3e-2), "mismatch vs reference"

    print("KERNEL_OK")
</pallas_src>

<mosaic_0001>
module attributes {stable_mosaic.version = 11 : i64} {
  func.func @_fused_mlp_kernel(%arg0: i32, %arg1: memref<2x8xf32, #tpu.memory_space<vmem>>, %arg2: memref<8x128xbf16, #tpu.memory_space<vmem>>, %arg3: memref<3x128x128xbf16, #tpu.memory_space<vmem>>, %arg4: memref<4x128xf32, #tpu.memory_space<vmem>>, %arg5: memref<2x128xf32, #tpu.memory_space<vmem>>) attributes {dimension_semantics = [#tpu.dimension_semantics<parallel>], iteration_bounds = array<i64: 1>, scalar_prefetch = 0 : i64, scratch_operands = 0 : i64, tpu.core_type = #tpu.core_type<tc>, window_params = [{transform_indices = @transform_0, window_bounds = array<i64: 2, 8>}, {pipeline_mode = #tpu.pipeline_mode<synchronous>, transform_indices = @transform_1, window_bounds = array<i64: 8, 128>}, {pipeline_mode = #tpu.pipeline_mode<synchronous>, transform_indices = @transform_2, window_bounds = array<i64: 3, 128, 128>}, {pipeline_mode = #tpu.pipeline_mode<synchronous>, transform_indices = @transform_3, window_bounds = array<i64: 4, 128>}, {transform_indices = @transform_4, window_bounds = array<i64: 2, 128>}]} {
    %c0 = arith.constant 0 : index
    %c0_0 = arith.constant 0 : index
    %0 = vector.load %arg4[%c0, %c0_0] : memref<4x128xf32, #tpu.memory_space<vmem>>, vector<4x128xf32>
    %c0_1 = arith.constant 0 : index
    %c0_2 = arith.constant 0 : index
    %1 = vector.load %arg1[%c0_1, %c0_2] : memref<2x8xf32, #tpu.memory_space<vmem>>, vector<2x8xf32>
    %2 = arith.truncf %1 : vector<2x8xf32> to vector<2x8xbf16>
    %c0_3 = arith.constant 0 : index
    %c0_4 = arith.constant 0 : index
    %3 = vector.load %arg2[%c0_3, %c0_4] : memref<8x128xbf16, #tpu.memory_space<vmem>>, vector<8x128xbf16>
    %cst = arith.constant dense<0.000000e+00> : vector<2x128xf32>
    %4 = tpu.matmul %2, %3, %cst {dimension_numbers = #tpu.dot_dimension_numbers<[1], [0], [0], [1], [0, 0, 1, 1], [], []>} : vector<2x8xbf16>, vector<8x128xbf16>, vector<2x128xf32> -> vector<2x128xf32>
    %5 = vector.extract_strided_slice %0 {offsets = [0, 0], sizes = [1, 128], strides = [1, 1]} : vector<4x128xf32> to vector<1x128xf32>
    %6 = vector.broadcast %5 : vector<1x128xf32> to vector<2x128xf32>
    %7 = arith.addf %4, %6 : vector<2x128xf32>
    %cst_5 = arith.constant 0.000000e+00 : f32
    %8 = vector.broadcast %cst_5 : f32 to vector<2x128xf32>
    %9 = arith.maximumf %7, %8 : vector<2x128xf32>
    %10 = arith.truncf %9 : vector<2x128xf32> to vector<2x128xbf16>
    %c0_6 = arith.constant 0 : index
    %c0_7 = arith.constant 0 : index
    %c0_8 = arith.constant 0 : index
    %11 = vector.load %arg3[%c0_6, %c0_7, %c0_8] : memref<3x128x128xbf16, #tpu.memory_space<vmem>>, vector<1x128x128xbf16>
    %12 = vector.shape_cast %11 : vector<1x128x128xbf16> to vector<128x128xbf16>
    %cst_9 = arith.constant dense<0.000000e+00> : vector<2x128xf32>
    %13 = tpu.matmul %10, %12, %cst_9 {dimension_numbers = #tpu.dot_dimension_numbers<[1], [0], [0], [1], [0, 0, 1, 1], [], []>} : vector<2x128xbf16>, vector<128x128xbf16>, vector<2x128xf32> -> vector<2x128xf32>
    %14 = vector.extract_strided_slice %0 {offsets = [1, 0], sizes = [1, 128], strides = [1, 1]} : vector<4x128xf32> to vector<1x128xf32>
    %15 = vector.broadcast %14 : vector<1x128xf32> to vector<2x128xf32>
    %16 = arith.addf %13, %15 : vector<2x128xf32>
    %cst_10 = arith.constant 0.000000e+00 : f32
    %17 = vector.broadcast %cst_10 : f32 to vector<2x128xf32>
    %18 = arith.maximumf %16, %17 : vector<2x128xf32>
    %19 = arith.truncf %18 : vector<2x128xf32> to vector<2x128xbf16>
    %c1 = arith.constant 1 : index
    %c0_11 = arith.constant 0 : index
    %c0_12 = arith.constant 0 : index
    %20 = vector.load %arg3[%c1, %c0_11, %c0_12] : memref<3x128x128xbf16, #tpu.memory_space<vmem>>, vector<1x128x128xbf16>
    %21 = vector.shape_cast %20 : vector<1x128x128xbf16> to vector<128x128xbf16>
    %cst_13 = arith.constant dense<0.000000e+00> : vector<2x128xf32>
    %22 = tpu.matmul %19, %21, %cst_13 {dimension_numbers = #tpu.dot_dimension_numbers<[1], [0], [0], [1], [0, 0, 1, 1], [], []>} : vector<2x128xbf16>, vector<128x128xbf16>, vector<2x128xf32> -> vector<2x128xf32>
    %23 = vector.extract_strided_slice %0 {offsets = [2, 0], sizes = [1, 128], strides = [1, 1]} : vector<4x128xf32> to vector<1x128xf32>
    %24 = vector.broadcast %23 : vector<1x128xf32> to vector<2x128xf32>
    %25 = arith.addf %22, %24 : vector<2x128xf32>
    %cst_14 = arith.constant 0.000000e+00 : f32
    %26 = vector.broadcast %cst_14 : f32 to vector<2x128xf32>
    %27 = arith.maximumf %25, %26 : vector<2x128xf32>
    %28 = arith.truncf %27 : vector<2x128xf32> to vector<2x128xbf16>
    %c2 = arith.constant 2 : index
    %c0_15 = arith.constant 0 : index
    %c0_16 = arith.constant 0 : index
    %29 = vector.load %arg3[%c2, %c0_15, %c0_16] : memref<3x128x128xbf16, #tpu.memory_space<vmem>>, vector<1x128x128xbf16>
    %30 = vector.shape_cast %29 : vector<1x128x128xbf16> to vector<128x128xbf16>
    %cst_17 = arith.constant dense<0.000000e+00> : vector<2x128xf32>
    %31 = tpu.matmul %28, %30, %cst_17 {dimension_numbers = #tpu.dot_dimension_numbers<[1], [0], [0], [1], [0, 0, 1, 1], [], []>} : vector<2x128xbf16>, vector<128x128xbf16>, vector<2x128xf32> -> vector<2x128xf32>
    %32 = vector.extract_strided_slice %0 {offsets = [3, 0], sizes = [1, 128], strides = [1, 1]} : vector<4x128xf32> to vector<1x128xf32>
    %33 = vector.broadcast %32 : vector<1x128xf32> to vector<2x128xf32>
    %34 = arith.addf %31, %33 : vector<2x128xf32>
    %c0_18 = arith.constant 0 : index
    %c0_19 = arith.constant 0 : index
    %35 = vector.load %arg5[%c0_18, %c0_19] : memref<2x128xf32, #tpu.memory_space<vmem>>, vector<2x128xf32>
    tpu.vector_store %arg5[%c0_18, %c0_19], %34 {strides = array<i32>} : memref<2x128xf32, #tpu.memory_space<vmem>>, vector<2x128xf32>,
    return
  }
  func.func @transform_0(%arg0: i32) -> (i32, i32) {
    %c0_i32 = arith.constant 0 : i32
    %c0_i32_0 = arith.constant 0 : i32
    return %arg0, %c0_i32 : i32, i32
  }
  func.func @transform_1(%arg0: i32) -> (i32, i32) {
    %c0_i32 = arith.constant 0 : i32
    %c0_i32_0 = arith.constant 0 : i32
    %c0_i32_1 = arith.constant 0 : i32
    return %c0_i32, %c0_i32_0 : i32, i32
  }
  func.func @transform_2(%arg0: i32) -> (i32, i32, i32) {
    %c0_i32 = arith.constant 0 : i32
    %c0_i32_0 = arith.constant 0 : i32
    %c0_i32_1 = arith.constant 0 : i32
    %c0_i32_2 = arith.constant 0 : i32
    return %c0_i32, %c0_i32_0, %c0_i32_1 : i32, i32, i32
  }
  func.func @transform_3(%arg0: i32) -> (i32, i32) {
    %c0_i32 = arith.constant 0 : i32
    %c0_i32_0 = arith.constant 0 : i32
    %c0_i32_1 = arith.constant 0 : i32
    return %c0_i32, %c0_i32_0 : i32, i32
  }
  func.func @transform_4(%arg0: i32) -> (i32, i32) {
    %c0_i32 = arith.constant 0 : i32
    %c0_i32_0 = arith.constant 0 : i32
    return %arg0, %c0_i32 : i32, i32
  }
}

</mosaic_0001>

<llo_original>
// kernel: tpu_custom_call.1
$region0: #{tpu_custom_call.1}
  #allocation0 [shape = 'u32[]', space=smem, size = 0x4, offset = 0x4, fixed_abs, tag = 'smem constant byte address 0x4 - core index']
  #allocation1 [shape = 'u32[144,128]{1,0:T(1,128)}', space=vmem, size = 0x12000, scoped, tag = 'internal scratch']
  %s0 = inlined_call_operand.hbm [shape: f32[2,8], index: 0, kind: input, shape index: {}]
  %s1 = inlined_call_operand.hbm [shape: bf16[8,128], index: 1, kind: input, shape index: {}]
  %s2 = inlined_call_operand.hbm [shape: bf16[3,128,128], index: 2, kind: input, shape index: {}]
  %s3 = inlined_call_operand.vmem [shape: f32[4,128], index: 3, kind: input, shape index: {}]
  %s4 = inlined_call_operand.hbm [shape: f32[2,128], index: 4, kind: output, shape index: {}]
  %s5 = sld [smem:[#allocation0]]
  $region38: #{tpu_custom_call.1} parent=0
    _
  %s7 = ssub.s32 1, %s5
  %s8 = scalar_select 0, %s7, %s5
  $region1: #{tpu_custom_call.1} parent=0
    #allocation2 [shape = 'u8[1024]{0}', space=vmem, size = 0x400, scoped, tag = 'input window, operand 0, single buffered']
    #allocation3 [shape = 's32[1]{0}', space=sflag, size = 0x4, scoped, tag = 'scoped memory for tpu_custom_call.1']
    #allocation4 [shape = 's32[1]{0}', space=sflag, size = 0x4, scoped, tag = 'scoped memory for tpu_custom_call.1']
    #allocation5 [shape = 'u8[2048]{0}', space=vmem, size = 0x800, scoped, tag = 'input window, operand 1, single buffered']
    #allocation6 [shape = 's32[1]{0}', space=sflag, size = 0x4, scoped, tag = 'scoped memory for tpu_custom_call.1']
    #allocation7 [shape = 'u8[98304]{0}', space=vmem, size = 0x18000, scoped, tag = 'input window, operand 2, single buffered']
    #allocation8 [shape = 'u8[1024]{0}', space=vmem, size = 0x400, scoped, tag = 'output window, operand 0, single buffered']
    %9 = vsyncpa [#allocation3], 0
    %10 = vsyncpa [#allocation6], 0
    %11 = vsyncpa [#allocation4], 0
    // Predicated region
    $region2: #{tpu_custom_call.1} parent=1 // pred_check
      _
    $region3: #{tpu_custom_call.1} parent=1 // pred_check_branch
      %13 = sbr.rel (0) target = $region5
    $region4: #{tpu_custom_call.1} parent=1 // pred_region
      %s15 = ssub.s32 32, 32
      %16 = vsyncadd [#allocation3], %s15
      %s18 = sshll.u32 [#allocation2], 4
      %s19 = int_to_ptr.vmem [resolvable:$true] %s18
      %21 = dma.hbm_to_vmem [thread:$0]  %s0, 32, %s19, [#allocation3]
    $region5: #{tpu_custom_call.1} parent=1 // pred_fallthru
      _
    // Predicated region
    $region6: #{tpu_custom_call.1} parent=1 // pred_check
      _
    $region7: #{tpu_custom_call.1} parent=1 // pred_check_branch
      %23 = sbr.rel (0) target = $region9
    $region8: #{tpu_custom_call.1} parent=1 // pred_region
      %s25 = ssub.s32 64, 64
      %26 = vsyncadd [#allocation6], %s25
      %s28 = sshll.u32 [#allocation5], 4
      %s29 = int_to_ptr.vmem [resolvable:$true] %s28
      %31 = dma.hbm_to_vmem [thread:$0]  %s1, 64, %s29, [#allocation6]
    $region9: #{tpu_custom_call.1} parent=1 // pred_fallthru
      _
    // Predicated region
    $region10: #{tpu_custom_call.1} parent=1 // pred_check
      _
    $region11: #{tpu_custom_call.1} parent=1 // pred_check_branch
      %33 = sbr.rel (0) target = $region13
    $region12: #{tpu_custom_call.1} parent=1 // pred_region
      %s35 = ssub.s32 3072, 3072
      %36 = vsyncadd [#allocation6], %s35
      %s37 = sshll.u32 [#allocation7], 4
      %s38 = int_to_ptr.vmem [resolvable:$true] %s37
      %43 = dma.hbm_to_vmem [thread:$0]  %s2, 3072, %s38, [#allocation6], 64, 64, 4
    $region13: #{tpu_custom_call.1} parent=1 // pred_fallthru
      _
    // Predicated region
    $region14: #{tpu_custom_call.1} parent=1 // pred_check
      _
    $region15: #{tpu_custom_call.1} parent=1 // pred_check_branch
      %45 = sbr.rel (0) target = $region17
    $region16: #{tpu_custom_call.1} parent=1 // pred_region
      _
    $region17: #{tpu_custom_call.1} parent=1 // pred_fallthru
      _
    // Predicated region
    $region18: #{tpu_custom_call.1} parent=1 // pred_check
      _
    $region19: #{tpu_custom_call.1} parent=1 // pred_check_branch
      %47 = sbr.rel (0) target = $region21
    $region20: #{tpu_custom_call.1} parent=1 // pred_region
      %48 = dma.done [#allocation3], 32
    $region21: #{tpu_custom_call.1} parent=1 // pred_fallthru
      _
    // Predicated region
    $region22: #{tpu_custom_call.1} parent=1 // pred_check
      _
    $region23: #{tpu_custom_call.1} parent=1 // pred_check_branch
      %50 = sbr.rel (0) target = $region25
    $region24: #{tpu_custom_call.1} parent=1 // pred_region
      %51 = dma.done [#allocation6], 64
    $region25: #{tpu_custom_call.1} parent=1 // pred_fallthru
      _
    // Predicated region
    $region26: #{tpu_custom_call.1} parent=1 // pred_check
      _
    $region27: #{tpu_custom_call.1} parent=1 // pred_check_branch
      %53 = sbr.rel (0) target = $region29
    $region28: #{tpu_custom_call.1} parent=1 // pred_region
      %54 = dma.done [#allocation6], 3072
    $region29: #{tpu_custom_call.1} parent=1 // pred_fallthru
      _
    %v56 = vld [vmem:[%s3] sm:$0xf]
    %v57 = vld [vmem:[#allocation2] sm:$0x3]
    %v58 = vpack.c.bf16 %v57, %v57
    %v59 = vld [vmem:[#allocation5] sm:$0xf]
    %v60 = vlaneseq
    %v61 = vshrl.u32 %v60, 7
    %v62 = vsub.s32 0, %v61
    %v63 = vrot.slane %v56, %v62
    %vm64 = vcmask 64512
    %v66 = vsel %vm64, %v58, 0
    %vm68 = vcmask 1043456
    %v70 = vsel %vm68, %v59, 0
    %72 = vmatprep.subr.bf16.mxu0 0
    %73 = vmatpush1.bf16.msra.mxu0 0
    %74 = vmatprep.subr.bf16.mxu0 0
    %75 = vmatpush1.bf16.msra.mxu0 0
    %76 = vmatprep.subr.bf16.mxu0 0
    %77 = vmatpush1.bf16.msra.mxu0 0
    %78 = vmatprep.subr.bf16.mxu0 0
    %79 = vmatpush1.bf16.msra.mxu0 0
    %80 = vmatprep.subr.bf16.mxu0 0
    %81 = vmatpush1.bf16.msra.mxu0 0
    %82 = vmatprep.subr.bf16.mxu0 0
    %83 = vmatpush1.bf16.msra.mxu0 0
    %84 = vmatprep.subr.bf16.mxu0 0
    %85 = vmatpush1.bf16.msra.mxu0 0
    %86 = vmatprep.subr.bf16.mxu0 0
    %87 = vmatpush1.bf16.msra.mxu0 %v70
    %88 = vmatprep.subr.bf16.mxu0 0
    %89 = vmatpush2.bf16.msra.mxu0 0
    %90 = vmatprep.subr.bf16.mxu0 0
    %91 = vmatpush2.bf16.msra.mxu0 0
    %92 = vmatprep.subr.bf16.mxu0 0
    %93 = vmatpush2.bf16.msra.mxu0 0
    %94 = vmatprep.subr.bf16.mxu0 0
    %95 = vmatpush2.bf16.msra.mxu0 0
    %96 = vmatprep.subr.bf16.mxu0 0
    %97 = vmatpush2.bf16.msra.mxu0 0
    %98 = vmatprep.subr.bf16.mxu0 0
    %99 = vmatpush2.bf16.msra.mxu0 0
    %100 = vmatprep.subr.bf16.mxu0 0
    %101 = vmatpush2.bf16.msra.mxu0 0
    %102 = vmatprep.subr.bf16.mxu0 0
    %103 = vmatpush2.bf16.msra.mxu0 0
    %104 = vmatprep.mubr.bf16.mxu0 0
    %105 = vmatmul.mubr.bf16.gmra.mxu0 %v66
    %v106 = vpop.f32.mrf.mxu0
    %v107 = vadd.f32 %v63, %v106
    %v108 = vpop.f32.mrf.mxu0
    %v109 = vpop.f32.mrf.mxu0
    %v110 = vpop.f32.mrf.mxu0
    %111 = vdwg.mxu0
    %v112 = vmax.f32 %v107, 0.0
    %v113 = vpack.c.bf16 %v112, %v112
    %v114 = vld [vmem:[#allocation7] sm:$0xf]
    %v115 = vld [vmem:[#allocation7 + $0x4] sm:$0xf]
    %v116 = vld [vmem:[#allocation7 + $0x8] sm:$0xf]
    %v117 = vld [vmem:[#allocation7 + $0xc] sm:$0xf]
    %v118 = vld [vmem:[#allocation7 + $0x10] sm:$0xf]
    %v119 = vld [vmem:[#allocation7 + $0x14] sm:$0xf]
    %v120 = vld [vmem:[#allocation7 + $0x18] sm:$0xf]
    %v121 = vld [vmem:[#allocation7 + $0x1c] sm:$0xf]
    %v122 = vld [vmem:[#allocation7 + $0x20] sm:$0xf]
    %v123 = vld [vmem:[#allocation7 + $0x24] sm:$0xf]
    %v124 = vld [vmem:[#allocation7 + $0x28] sm:$0xf]
    %v125 = vld [vmem:[#allocation7 + $0x2c] sm:$0xf]
    %v126 = vld [vmem:[#allocation7 + $0x30] sm:$0xf]
    %v127 = vld [vmem:[#allocation7 + $0x34] sm:$0xf]
    %v128 = vld [vmem:[#allocation7 + $0x38] sm:$0xf]
    %v129 = vld [vmem:[#allocation7 + $0x3c] sm:$0xf]
    %v130 = vlaneseq
    %v131 = vshrl.u32 %v130, 7
    %v132 = vsub.s32 1, %v131
    %v133 = vrot.slane %v56, %v132
    %v150 = vunpack.c.l.b16 %v114
    %v151 = vunpack.c.l.b16 %v115
    %v152 = vunpack.c.l.b16 %v116
    %v153 = vunpack.c.l.b16 %v117
    %v154 = vunpack.c.l.b16 %v118
    %v155 = vunpack.c.l.b16 %v119
    %v156 = vunpack.c.l.b16 %v120
    %v157 = vunpack.c.l.b16 %v121
    %v158 = vunpack.c.l.b16 %v122
    %v159 = vunpack.c.l.b16 %v123
    %v160 = vunpack.c.l.b16 %v124
    %v161 = vunpack.c.l.b16 %v125
    %v162 = vunpack.c.l.b16 %v126
    %v163 = vunpack.c.l.b16 %v127
    %v164 = vunpack.c.l.b16 %v128
    %v165 = vunpack.c.l.b16 %v129
    %v166 = vpack.c.b16 %v151, %v150
    %v167 = vpack.c.b16 %v153, %v152
    %v168 = vpack.c.b16 %v155, %v154
    %v169 = vpack.c.b16 %v157, %v156
    %v170 = vpack.c.b16 %v159, %v158
    %v171 = vpack.c.b16 %v161, %v160
    %v172 = vpack.c.b16 %v163, %v162
    %v173 = vpack.c.b16 %v165, %v164
    %182 = vmatprep.subr.bf16.mxu0 0
    %183 = vmatpush1.bf16.msra.mxu0 %v173
    %184 = vmatprep.subr.bf16.mxu0 0
    %185 = vmatpush1.bf16.msra.mxu0 %v172
    %186 = vmatprep.subr.bf16.mxu0 0
    %187 = vmatpush1.bf16.msra.mxu0 %v171
    %188 = vmatprep.subr.bf16.mxu0 0
    %189 = vmatpush1.bf16.msra.mxu0 %v170
    %190 = vmatprep.subr.bf16.mxu0 0
    %191 = vmatpush1.bf16.msra.mxu0 %v169
    %192 = vmatprep.subr.bf16.mxu0 0
    %193 = vmatpush1.bf16.msra.mxu0 %v168
    %194 = vmatprep.subr.bf16.mxu0 0
    %195 = vmatpush1.bf16.msra.mxu0 %v167
    %196 = vmatprep.subr.bf16.mxu0 0
    %197 = vmatpush1.bf16.msra.mxu0 %v166
    %198 = vmatprep.subr.bf16.mxu0 0
    %199 = vmatpush2.bf16.msra.mxu0 0
    %200 = vmatprep.subr.bf16.mxu0 0
    %201 = vmatpush2.bf16.msra.mxu0 0
    %202 = vmatprep.subr.bf16.mxu0 0
    %203 = vmatpush2.bf16.msra.mxu0 0
    %204 = vmatprep.subr.bf16.mxu0 0
    %205 = vmatpush2.bf16.msra.mxu0 0
    %206 = vmatprep.subr.bf16.mxu0 0
    %207 = vmatpush2.bf16.msra.mxu0 0
    %208 = vmatprep.subr.bf16.mxu0 0
    %209 = vmatpush2.bf16.msra.mxu0 0
    %210 = vmatprep.subr.bf16.mxu0 0
    %211 = vmatpush2.bf16.msra.mxu0 0
    %212 = vmatprep.subr.bf16.mxu0 0
    %213 = vmatpush2.bf16.msra.mxu0 0
    %214 = vmatprep.mubr.bf16.mxu0 0
    %215 = vmatmul.mubr.bf16.gmra.mxu0 %v113
    %v216 = vpop.f32.mrf.mxu0
    %v217 = vadd.f32 %v133, %v216
    %v218 = vpop.f32.mrf.mxu0
    %v219 = vpop.f32.mrf.mxu0
    %v220 = vpop.f32.mrf.mxu0
    %221 = vdwg.mxu0
    %v222 = vmax.f32 %v217, 0.0
    %v223 = vpack.c.bf16 %v222, %v222
    %s224 = scalar_lea.vmem [#allocation7], 64
    %v225 = vld [vmem:[%s224] sm:$0xf]
    %v226 = vld [vmem:[%s224 + $0x4] sm:$0xf]
    %v227 = vld [vmem:[%s224 + $0x8] sm:$0xf]
    %v228 = vld [vmem:[%s224 + $0xc] sm:$0xf]
    %v229 = vld [vmem:[%s224 + $0x10] sm:$0xf]
    %v230 = vld [vmem:[%s224 + $0x14] sm:$0xf]
    %v231 = vld [vmem:[%s224 + $0x18] sm:$0xf]
    %v232 = vld [vmem:[%s224 + $0x1c] sm:$0xf]
    %v233 = vld [vmem:[%s224 + $0x20] sm:$0xf]
    %v234 = vld [vmem:[%s224 + $0x24] sm:$0xf]
    %v235 = vld [vmem:[%s224 + $0x28] sm:$0xf]
    %v236 = vld [vmem:[%s224 + $0x2c] sm:$0xf]
    %v237 = vld [vmem:[%s224 + $0x30] sm:$0xf]
    %v238 = vld [vmem:[%s224 + $0x34] sm:$0xf]
    %v239 = vld [vmem:[%s224 + $0x38] sm:$0xf]
    %v240 = vld [vmem:[%s224 + $0x3c] sm:$0xf]
    %v241 = vlaneseq
    %v242 = vshrl.u32 %v241, 7
    %v243 = vsub.s32 2, %v242
    %v244 = vrot.slane %v56, %v243
    %v261 = vunpack.c.l.b16 %v225
    %v262 = vunpack.c.l.b16 %v226
    %v263 = vunpack.c.l.b16 %v227
    %v264 = vunpack.c.l.b16 %v228
    %v265 = vunpack.c.l.b16 %v229
    %v266 = vunpack.c.l.b16 %v230
    %v267 = vunpack.c.l.b16 %v231
    %v268 = vunpack.c.l.b16 %v232
    %v269 = vunpack.c.l.b16 %v233
    %v270 = vunpack.c.l.b16 %v234
    %v271 = vunpack.c.l.b16 %v235
    %v272 = vunpack.c.l.b16 %v236
    %v273 = vunpack.c.l.b16 %v237
    %v274 = vunpack.c.l.b16 %v238
    %v275 = vunpack.c.l.b16 %v239
    %v276 = vunpack.c.l.b16 %v240
    %v277 = vpack.c.b16 %v262, %v261
    %v278 = vpack.c.b16 %v264, %v263
    %v279 = vpack.c.b16 %v266, %v265
    %v280 = vpack.c.b16 %v268, %v267
    %v281 = vpack.c.b16 %v270, %v269
    %v282 = vpack.c.b16 %v272, %v271
    %v283 = vpack.c.b16 %v274, %v273
    %v284 = vpack.c.b16 %v276, %v275
    %293 = vmatprep.subr.bf16.mxu0 0
    %294 = vmatpush1.bf16.msra.mxu0 %v284
    %295 = vmatprep.subr.bf16.mxu0 0
    %296 = vmatpush1.bf16.msra.mxu0 %v283
    %297 = vmatprep.subr.bf16.mxu0 0
    %298 = vmatpush1.bf16.msra.mxu0 %v282
    %299 = vmatprep.subr.bf16.mxu0 0
    %300 = vmatpush1.bf16.msra.mxu0 %v281
    %301 = vmatprep.subr.bf16.mxu0 0
    %302 = vmatpush1.bf16.msra.mxu0 %v280
    %303 = vmatprep.subr.bf16.mxu0 0
    %304 = vmatpush1.bf16.msra.mxu0 %v279
    %305 = vmatprep.subr.bf16.mxu0 0
    %306 = vmatpush1.bf16.msra.mxu0 %v278
    %307 = vmatprep.subr.bf16.mxu0 0
    %308 = vmatpush1.bf16.msra.mxu0 %v277
    %309 = vmatprep.subr.bf16.mxu0 0
    %310 = vmatpush2.bf16.msra.mxu0 0
    %311 = vmatprep.subr.bf16.mxu0 0
    %312 = vmatpush2.bf16.msra.mxu0 0
    %313 = vmatprep.subr.bf16.mxu0 0
    %314 = vmatpush2.bf16.msra.mxu0 0
    %315 = vmatprep.subr.bf16.mxu0 0
    %316 = vmatpush2.bf16.msra.mxu0 0
    %317 = vmatprep.subr.bf16.mxu0 0
    %318 = vmatpush2.bf16.msra.mxu0 0
    %319 = vmatprep.subr.bf16.mxu0 0
    %320 = vmatpush2.bf16.msra.mxu0 0
    %321 = vmatprep.subr.bf16.mxu0 0
    %322 = vmatpush2.bf16.msra.mxu0 0
    %323 = vmatprep.subr.bf16.mxu0 0
    %324 = vmatpush2.bf16.msra.mxu0 0
    %325 = vmatprep.mubr.bf16.mxu0 0
    %326 = vmatmul.mubr.bf16.gmra.mxu0 %v223
    %v327 = vpop.f32.mrf.mxu0
    %v328 = vadd.f32 %v244, %v327
    %v329 = vpop.f32.mrf.mxu0
    %v330 = vpop.f32.mrf.mxu0
    %v331 = vpop.f32.mrf.mxu0
    %332 = vdwg.mxu0
    %v333 = vmax.f32 %v328, 0.0
    %v334 = vpack.c.bf16 %v333, %v333
    %s335 = scalar_lea.vmem [#allocation7], 128
    %v336 = vld [vmem:[%s335] sm:$0xf]
    %v337 = vld [vmem:[%s335 + $0x4] sm:$0xf]
    %v338 = vld [vmem:[%s335 + $0x8] sm:$0xf]
    %v339 = vld [vmem:[%s335 + $0xc] sm:$0xf]
    %v340 = vld [vmem:[%s335 + $0x10] sm:$0xf]
    %v341 = vld [vmem:[%s335 + $0x14] sm:$0xf]
    %v342 = vld [vmem:[%s335 + $0x18] sm:$0xf]
    %v343 = vld [vmem:[%s335 + $0x1c] sm:$0xf]
    %v344 = vld [vmem:[%s335 + $0x20] sm:$0xf]
    %v345 = vld [vmem:[%s335 + $0x24] sm:$0xf]
    %v346 = vld [vmem:[%s335 + $0x28] sm:$0xf]
    %v347 = vld [vmem:[%s335 + $0x2c] sm:$0xf]
    %v348 = vld [vmem:[%s335 + $0x30] sm:$0xf]
    %v349 = vld [vmem:[%s335 + $0x34] sm:$0xf]
    %v350 = vld [vmem:[%s335 + $0x38] sm:$0xf]
    %v351 = vld [vmem:[%s335 + $0x3c] sm:$0xf]
    %v352 = vlaneseq
    %v353 = vshrl.u32 %v352, 7
    %v354 = vsub.s32 3, %v353
    %v355 = vrot.slane %v56, %v354
    %v372 = vunpack.c.l.b16 %v336
    %v373 = vunpack.c.l.b16 %v337
    %v374 = vunpack.c.l.b16 %v338
    %v375 = vunpack.c.l.b16 %v339
    %v376 = vunpack.c.l.b16 %v340
    %v377 = vunpack.c.l.b16 %v341
    %v378 = vunpack.c.l.b16 %v342
    %v379 = vunpack.c.l.b16 %v343
    %v380 = vunpack.c.l.b16 %v344
    %v381 = vunpack.c.l.b16 %v345
    %v382 = vunpack.c.l.b16 %v346
    %v383 = vunpack.c.l.b16 %v347
    %v384 = vunpack.c.l.b16 %v348
    %v385 = vunpack.c.l.b16 %v349
    %v386 = vunpack.c.l.b16 %v350
    %v387 = vunpack.c.l.b16 %v351
    %v388 = vpack.c.b16 %v373, %v372
    %v389 = vpack.c.b16 %v375, %v374
    %v390 = vpack.c.b16 %v377, %v376
    %v391 = vpack.c.b16 %v379, %v378
    %v392 = vpack.c.b16 %v381, %v380
    %v393 = vpack.c.b16 %v383, %v382
    %v394 = vpack.c.b16 %v385, %v384
    %v395 = vpack.c.b16 %v387, %v386
    %404 = vmatprep.subr.bf16.mxu0 0
    %405 = vmatpush1.bf16.msra.mxu0 %v395
    %406 = vmatprep.subr.bf16.mxu0 0
    %407 = vmatpush1.bf16.msra.mxu0 %v394
    %408 = vmatprep.subr.bf16.mxu0 0
    %409 = vmatpush1.bf16.msra.mxu0 %v393
    %410 = vmatprep.subr.bf16.mxu0 0
    %411 = vmatpush1.bf16.msra.mxu0 %v392
    %412 = vmatprep.subr.bf16.mxu0 0
    %413 = vmatpush1.bf16.msra.mxu0 %v391
    %414 = vmatprep.subr.bf16.mxu0 0
    %415 = vmatpush1.bf16.msra.mxu0 %v390
    %416 = vmatprep.subr.bf16.mxu0 0
    %417 = vmatpush1.bf16.msra.mxu0 %v389
    %418 = vmatprep.subr.bf16.mxu0 0
    %419 = vmatpush1.bf16.msra.mxu0 %v388
    %420 = vmatprep.subr.bf16.mxu0 0
    %421 = vmatpush2.bf16.msra.mxu0 0
    %422 = vmatprep.subr.bf16.mxu0 0
    %423 = vmatpush2.bf16.msra.mxu0 0
    %424 = vmatprep.subr.bf16.mxu0 0
    %425 = vmatpush2.bf16.msra.mxu0 0
    %426 = vmatprep.subr.bf16.mxu0 0
    %427 = vmatpush2.bf16.msra.mxu0 0
    %428 = vmatprep.subr.bf16.mxu0 0
    %429 = vmatpush2.bf16.msra.mxu0 0
    %430 = vmatprep.subr.bf16.mxu0 0
    %431 = vmatpush2.bf16.msra.mxu0 0
    %432 = vmatprep.subr.bf16.mxu0 0
    %433 = vmatpush2.bf16.msra.mxu0 0
    %434 = vmatprep.subr.bf16.mxu0 0
    %435 = vmatpush2.bf16.msra.mxu0 0
    %436 = vmatprep.mubr.bf16.mxu0 0
    %437 = vmatmul.mubr.bf16.gmra.mxu0 %v334
    %v438 = vpop.f32.mrf.mxu0
    %v439 = vadd.f32 %v355, %v438
    %v440 = vpop.f32.mrf.mxu0
    %v441 = vpop.f32.mrf.mxu0
    %v442 = vpop.f32.mrf.mxu0
    %443 = vdwg.mxu0
    %444 = vst [vmem:[#allocation8] sm:$0x3] %v439
    // Predicated region
    $region30: #{tpu_custom_call.1} parent=1 // pred_check
      _
    $region31: #{tpu_custom_call.1} parent=1 // pred_check_branch
      %446 = sbr.rel (0) target = $region33
    $region32: #{tpu_custom_call.1} parent=1 // pred_region
      %s448 = ssub.s32 32, 32
      %449 = vsyncadd [#allocation4], %s448
      %s451 = sshll.u32 [#allocation8], 4
      %s452 = int_to_ptr.vmem [resolvable:$true] %s451
      %454 = dma.vmem_to_hbm [thread:$0]  %s452, 32, %s4, [#allocation4]
    $region33: #{tpu_custom_call.1} parent=1 // pred_fallthru
      _
    // Predicated region
    $region34: #{tpu_custom_call.1} parent=1 // pred_check
      _
    $region35: #{tpu_custom_call.1} parent=1 // pred_check_branch
      %456 = sbr.rel (0) target = $region37
    $region36: #{tpu_custom_call.1} parent=1 // pred_region
      %457 = dma.done [#allocation4], 32
    $region37: #{tpu_custom_call.1} parent=1 // pred_fallthru
      _
    %458 = vsyncpa [#allocation3], 1
    %459 = vsyncpa [#allocation6], 1
    %460 = vsyncpa [#allocation4], 1

</llo_original>
